<compile_context>
chip_gen: v5e
topology: v5e:2x2
jax: 0.10.0
libtpu: 0.0.40
codegen_flags: <defaults>
</compile_context>

<pallas_src>
import functools
import math

import jax
import jax.numpy as jnp
from jax.experimental import pallas as pl
from jax.experimental.pallas import tpu as pltpu

LOG_SQRT_2PI = 0.5 * math.log(2.0 * math.pi)
LANE = 128


def _round_up(x, m):
    return ((x + m - 1) // m) * m


# ---------------------------------------------------------------------------
# Kernel: one batch tile, fused actor+critic MLP + Normal sample + log_prob.
# ---------------------------------------------------------------------------
def actor_critic_fused_kernel(act_dim,
                              obs_ref, eps_ref, logstd_ref,
                              w1_ref, b1_ref, w2_ref, b2_ref, w3_ref, b3_ref,
                              out_ref):
    mdt = w1_ref.dtype                       # matmul operand dtype (f32 or bf16)

    # --- fused actor|critic MLP: 3 matmuls, f32 accumulation, f32 elementwise ---
    obs = obs_ref[...]                       # (TB, D_PAD), already mdt
    h = jnp.tanh(jnp.dot(obs, w1_ref[...],
                         preferred_element_type=jnp.float32) + b1_ref[...])
    h = jnp.tanh(jnp.dot(h.astype(mdt), w2_ref[...],
                         preferred_element_type=jnp.float32) + b2_ref[...])
    out3 = (jnp.dot(h.astype(mdt), w3_ref[...],
                    preferred_element_type=jnp.float32) + b3_ref[...])
    # out3 lanes: [0:act_dim] = mu, [act_dim] = v, rest = 0.

    # --- Normal(mu, std) reparameterized sample + summed log_prob (z == eps) ---
    log_std = logstd_ref[...]                # (1, OUT_PAD), zero in padded lanes
    std = jnp.exp(log_std)
    eps = eps_ref[...]                       # (TB, OUT_PAD), zero in padded lanes
    a_full = out3 + std * eps                # action lanes correct; v lane unchanged

    col = jax.lax.broadcasted_iota(jnp.int32, a_full.shape, 1)
    logp_per = -0.5 * (eps * eps) - log_std - LOG_SQRT_2PI
    logp_sum = jnp.sum(jnp.where(col < act_dim, logp_per, 0.0),
                       axis=-1, keepdims=True)

    # Pack lane-dense slab: action | v | logp | zero padding.
    out_ref[...] = jnp.where(col == act_dim + 1, logp_sum, a_full)


# ---------------------------------------------------------------------------
# Parameter packing: fuse actor + critic weights, zero-pad to 128 lanes.
# ---------------------------------------------------------------------------
def pack_params(p, obs_dim, hidden_sizes, act_dim, matmul_dtype=jnp.float32):
    h1, h2 = hidden_sizes
    D = _round_up(obs_dim, LANE)
    H1P = _round_up(2 * h1, LANE)
    H2P = _round_up(2 * h2, LANE)
    OUTP = _round_up(act_dim + 2, LANE)
    assert act_dim + 2 <= OUTP

    w1 = jnp.zeros((D, H1P), jnp.float32)
    w1 = w1.at[:obs_dim, :h1].set(p["w1"])
    w1 = w1.at[:obs_dim, h1:2 * h1].set(p["vw1"])
    b1 = jnp.zeros((1, H1P), jnp.float32)
    b1 = b1.at[:, :h1].set(p["b1"]).at[:, h1:2 * h1].set(p["vb1"])

    w2 = jnp.zeros((H1P, H2P), jnp.float32)           # block-diagonal
    w2 = w2.at[:h1, :h2].set(p["w2"])
    w2 = w2.at[h1:2 * h1, h2:2 * h2].set(p["vw2"])
    b2 = jnp.zeros((1, H2P), jnp.float32)
    b2 = b2.at[:, :h2].set(p["b2"]).at[:, h2:2 * h2].set(p["vb2"])

    w3 = jnp.zeros((H2P, OUTP), jnp.float32)          # block-diagonal
    w3 = w3.at[:h2, :act_dim].set(p["wmu"])
    w3 = w3.at[h2:2 * h2, act_dim:act_dim + 1].set(p["vw3"])
    b3 = jnp.zeros((1, OUTP), jnp.float32)
    b3 = b3.at[:, :act_dim].set(p["bmu"]).at[:, act_dim:act_dim + 1].set(p["vb3"])

    log_std = jnp.zeros((1, OUTP), jnp.float32).at[:, :act_dim].set(p["log_std"])

    return dict(
        w1=w1.astype(matmul_dtype), b1=b1,
        w2=w2.astype(matmul_dtype), b2=b2,
        w3=w3.astype(matmul_dtype), b3=b3,
        log_std=log_std,
        dims=(obs_dim, act_dim, D, H1P, H2P, OUTP),
    )


# ---------------------------------------------------------------------------
# Wrapper: pad batch, build grid over batch tiles, call the kernel, unpack.
# ---------------------------------------------------------------------------
def mlp_actor_critic_step(obs, packed, eps, *, tile_b=512):
    """Returns (a, v, logp_a) matching MLPActorCritic._step (Gaussian actor)."""
    obs_dim, act_dim, D, H1P, H2P, OUTP = packed["dims"]
    B = obs.shape[0]
    mdt = packed["w1"].dtype

    tile_b = min(tile_b, _round_up(B, 8))
    Bp = _round_up(B, tile_b)
    grid = (Bp // tile_b,)

    obs_p = jnp.zeros((Bp, D), mdt).at[:B, :obs_dim].set(obs.astype(mdt))
    eps_p = jnp.zeros((Bp, OUTP), jnp.float32).at[:B, :act_dim].set(eps)

    itemsize = jnp.dtype(mdt).itemsize
    w_elems = D * H1P + H1P * H2P + H2P * OUTP
    cost = pl.CostEstimate(
        flops=2 * Bp * w_elems,
        transcendentals=Bp * (H1P + H2P) + OUTP,
        bytes_accessed=(obs_p.size * itemsize + eps_p.size * 4 + Bp * OUTP * 4
                        + w_elems * itemsize + (H1P + H2P + 2 * OUTP) * 4),
    )

    batch_spec_obs = pl.BlockSpec((tile_b, D), lambda i: (i, 0))
    batch_spec_out = pl.BlockSpec((tile_b, OUTP), lambda i: (i, 0))
    resident = lambda shape: pl.BlockSpec(shape, lambda i: (0, 0))

    slab = pl.pallas_call(
        functools.partial(actor_critic_fused_kernel, act_dim),
        out_shape=jax.ShapeDtypeStruct((Bp, OUTP), jnp.float32),
        grid=grid,
        in_specs=[
            batch_spec_obs,                 # obs
            batch_spec_out,                 # eps
            resident((1, OUTP)),            # log_std
            resident((D, H1P)), resident((1, H1P)),     # layer 1
            resident((H1P, H2P)), resident((1, H2P)),   # layer 2
            resident((H2P, OUTP)), resident((1, OUTP)), # layer 3
        ],
        out_specs=batch_spec_out,
        compiler_params=pltpu.CompilerParams(
            dimension_semantics=("parallel",)),
        cost_estimate=cost,
    )(obs_p, eps_p, packed["log_std"],
      packed["w1"], packed["b1"], packed["w2"], packed["b2"],
      packed["w3"], packed["b3"])

    a = slab[:B, :act_dim]
    v = slab[:B, act_dim]
    logp = slab[:B, act_dim + 1]
    return a, v, logp


# ---------------------------------------------------------------------------
# Synthetic parameters + pure-JAX reference (for correctness check).
# ---------------------------------------------------------------------------
def init_params(key, obs_dim, hidden_sizes, act_dim):
    sizes_pi = [obs_dim] + list(hidden_sizes) + [act_dim]
    sizes_v = [obs_dim] + list(hidden_sizes) + [1]
    keys = jax.random.split(key, 2 * (len(sizes_pi) - 1 + len(sizes_v) - 1))
    ki = iter(keys)

    def linear(in_d, out_d):
        w = 0.1 * jax.random.normal(next(ki), (in_d, out_d), dtype=jnp.float32)
        b = 0.1 * jax.random.normal(next(ki), (1, out_d), dtype=jnp.float32)
        return w, b

    p = {}
    (p["w1"], p["b1"]) = linear(sizes_pi[0], sizes_pi[1])
    (p["w2"], p["b2"]) = linear(sizes_pi[1], sizes_pi[2])
    (p["wmu"], p["bmu"]) = linear(sizes_pi[2], sizes_pi[3])
    (p["vw1"], p["vb1"]) = linear(sizes_v[0], sizes_v[1])
    (p["vw2"], p["vb2"]) = linear(sizes_v[1], sizes_v[2])
    (p["vw3"], p["vb3"]) = linear(sizes_v[2], sizes_v[3])
    # log_std = -0.5 * ones(act_dim)   (matches MLPGaussianActor.__init__)
    p["log_std"] = jnp.full((1, act_dim), -0.5, dtype=jnp.float32)
    return p


def reference_step(obs, params, eps):
    h = jnp.tanh(obs @ params["w1"] + params["b1"])
    h = jnp.tanh(h @ params["w2"] + params["b2"])
    mu = h @ params["wmu"] + params["bmu"]
    std = jnp.exp(params["log_std"])
    a = mu + std * eps
    z = (a - mu) / std
    logp = jnp.sum(-0.5 * z * z - params["log_std"] - LOG_SQRT_2PI, axis=-1)
    hv = jnp.tanh(obs @ params["vw1"] + params["vb1"])
    hv = jnp.tanh(hv @ params["vw2"] + params["vb2"])
    v = jnp.squeeze(hv @ params["vw3"] + params["vb3"], axis=-1)
    return a, v, logp


if __name__ == "__main__":
    B, obs_dim, act_dim = 8, 16, 4
    hidden_sizes = (32, 32)

    key = jax.random.PRNGKey(0)
    k_obs, k_eps, k_par = jax.random.split(key, 3)
    obs = jax.random.normal(k_obs, (B, obs_dim), dtype=jnp.float32)
    eps = jax.random.normal(k_eps, (B, act_dim), dtype=jnp.float32)  # Normal noise
    params = init_params(k_par, obs_dim, hidden_sizes, act_dim)

    a_ref, v_ref, logp_ref = reference_step(obs, params, eps)

    # f32 matmul path (exact check).
    packed_f32 = pack_params(params, obs_dim, hidden_sizes, act_dim, jnp.float32)
    a, v, logp = mlp_actor_critic_step(obs, packed_f32, eps)
    jax.block_until_ready((a, v, logp))
    assert jnp.allclose(a, a_ref, atol=1e-4), "action mismatch (f32)"
    assert jnp.allclose(v, v_ref, atol=1e-4), "value mismatch (f32)"
    assert jnp.allclose(logp, logp_ref, atol=1e-4), "logp mismatch (f32)"

    # bf16 matmul-operand path (v6e/v7x fast path; elementwise stays f32).
    packed_bf16 = pack_params(params, obs_dim, hidden_sizes, act_dim, jnp.bfloat16)
    a16, v16, logp16 = mlp_actor_critic_step(obs, packed_bf16, eps)
    jax.block_until_ready((a16, v16, logp16))
    assert jnp.allclose(a16, a_ref, atol=1e-1), "action mismatch (bf16)"
    assert jnp.allclose(v16, v_ref, atol=1e-1), "value mismatch (bf16)"
    assert jnp.allclose(logp16, logp_ref, atol=1e-1), "logp mismatch (bf16)"

    print("KERNEL_OK")
</pallas_src>

<mosaic_0001>
module attributes {stable_mosaic.version = 11 : i64} {
  func.func @actor_critic_fused_kernel(%arg0: i32, %arg1: memref<8x128xf32, #tpu.memory_space<vmem>>, %arg2: memref<8x128xf32, #tpu.memory_space<vmem>>, %arg3: memref<1x128xf32, #tpu.memory_space<vmem>>, %arg4: memref<128x128xf32, #tpu.memory_space<vmem>>, %arg5: memref<1x128xf32, #tpu.memory_space<vmem>>, %arg6: memref<128x128xf32, #tpu.memory_space<vmem>>, %arg7: memref<1x128xf32, #tpu.memory_space<vmem>>, %arg8: memref<128x128xf32, #tpu.memory_space<vmem>>, %arg9: memref<1x128xf32, #tpu.memory_space<vmem>>, %arg10: memref<8x128xf32, #tpu.memory_space<vmem>>) attributes {dimension_semantics = [#tpu.dimension_semantics<parallel>], iteration_bounds = array<i64: 1>, scalar_prefetch = 0 : i64, scratch_operands = 0 : i64, tpu.core_type = #tpu.core_type<tc>, window_params = [{transform_indices = @transform_0, window_bounds = array<i64: 8, 128>}, {transform_indices = @transform_1, window_bounds = array<i64: 8, 128>}, {pipeline_mode = #tpu.pipeline_mode<synchronous>, transform_indices = @transform_2, window_bounds = array<i64: 1, 128>}, {pipeline_mode = #tpu.pipeline_mode<synchronous>, transform_indices = @transform_3, window_bounds = array<i64: 128, 128>}, {pipeline_mode = #tpu.pipeline_mode<synchronous>, transform_indices = @transform_4, window_bounds = array<i64: 1, 128>}, {pipeline_mode = #tpu.pipeline_mode<synchronous>, transform_indices = @transform_5, window_bounds = array<i64: 128, 128>}, {pipeline_mode = #tpu.pipeline_mode<synchronous>, transform_indices = @transform_6, window_bounds = array<i64: 1, 128>}, {pipeline_mode = #tpu.pipeline_mode<synchronous>, transform_indices = @transform_7, window_bounds = array<i64: 128, 128>}, {pipeline_mode = #tpu.pipeline_mode<synchronous>, transform_indices = @transform_8, window_bounds = array<i64: 1, 128>}, {transform_indices = @transform_9, window_bounds = array<i64: 8, 128>}]} {
    %c0 = arith.constant 0 : index
    %c0_0 = arith.constant 0 : index
    %0 = vector.load %arg1[%c0, %c0_0] : memref<8x128xf32, #tpu.memory_space<vmem>>, vector<8x128xf32>
    %c0_1 = arith.constant 0 : index
    %c0_2 = arith.constant 0 : index
    %1 = vector.load %arg4[%c0_1, %c0_2] : memref<128x128xf32, #tpu.memory_space<vmem>>, vector<128x128xf32>
    %cst = arith.constant dense<0.000000e+00> : vector<8x128xf32>
    %2 = tpu.matmul %0, %1, %cst {dimension_numbers = #tpu.dot_dimension_numbers<[1], [0], [0], [1], [0, 0, 1, 1], [], []>} : vector<8x128xf32>, vector<128x128xf32>, vector<8x128xf32> -> vector<8x128xf32>
    %c0_3 = arith.constant 0 : index
    %c0_4 = arith.constant 0 : index
    %3 = vector.load %arg5[%c0_3, %c0_4] : memref<1x128xf32, #tpu.memory_space<vmem>>, vector<1x128xf32>
    %4 = vector.broadcast %3 : vector<1x128xf32> to vector<8x128xf32>
    %5 = arith.addf %2, %4 : vector<8x128xf32>
    %6 = math.tanh %5 : vector<8x128xf32>
    %c0_5 = arith.constant 0 : index
    %c0_6 = arith.constant 0 : index
    %7 = vector.load %arg6[%c0_5, %c0_6] : memref<128x128xf32, #tpu.memory_space<vmem>>, vector<128x128xf32>
    %cst_7 = arith.constant dense<0.000000e+00> : vector<8x128xf32>
    %8 = tpu.matmul %6, %7, %cst_7 {dimension_numbers = #tpu.dot_dimension_numbers<[1], [0], [0], [1], [0, 0, 1, 1], [], []>} : vector<8x128xf32>, vector<128x128xf32>, vector<8x128xf32> -> vector<8x128xf32>
    %c0_8 = arith.constant 0 : index
    %c0_9 = arith.constant 0 : index
    %9 = vector.load %arg7[%c0_8, %c0_9] : memref<1x128xf32, #tpu.memory_space<vmem>>, vector<1x128xf32>
    %10 = vector.broadcast %9 : vector<1x128xf32> to vector<8x128xf32>
    %11 = arith.addf %8, %10 : vector<8x128xf32>
    %12 = math.tanh %11 : vector<8x128xf32>
    %c0_10 = arith.constant 0 : index
    %c0_11 = arith.constant 0 : index
    %13 = vector.load %arg8[%c0_10, %c0_11] : memref<128x128xf32, #tpu.memory_space<vmem>>, vector<128x128xf32>
    %cst_12 = arith.constant dense<0.000000e+00> : vector<8x128xf32>
    %14 = tpu.matmul %12, %13, %cst_12 {dimension_numbers = #tpu.dot_dimension_numbers<[1], [0], [0], [1], [0, 0, 1, 1], [], []>} : vector<8x128xf32>, vector<128x128xf32>, vector<8x128xf32> -> vector<8x128xf32>
    %c0_13 = arith.constant 0 : index
    %c0_14 = arith.constant 0 : index
    %15 = vector.load %arg9[%c0_13, %c0_14] : memref<1x128xf32, #tpu.memory_space<vmem>>, vector<1x128xf32>
    %16 = vector.broadcast %15 : vector<1x128xf32> to vector<8x128xf32>
    %17 = arith.addf %14, %16 : vector<8x128xf32>
    %c0_15 = arith.constant 0 : index
    %c0_16 = arith.constant 0 : index
    %18 = vector.load %arg3[%c0_15, %c0_16] : memref<1x128xf32, #tpu.memory_space<vmem>>, vector<1x128xf32>
    %19 = math.exp %18 : vector<1x128xf32>
    %c0_17 = arith.constant 0 : index
    %c0_18 = arith.constant 0 : index
    %20 = vector.load %arg2[%c0_17, %c0_18] : memref<8x128xf32, #tpu.memory_space<vmem>>, vector<8x128xf32>
    %21 = vector.broadcast %19 : vector<1x128xf32> to vector<8x128xf32>
    %22 = arith.mulf %21, %20 : vector<8x128xf32>
    %23 = arith.addf %17, %22 : vector<8x128xf32>
    %24 = tpu.iota {dimensions = array<i32: 1>} : vector<8x128xi32>
    %25 = arith.mulf %20, %20 : vector<8x128xf32>
    %cst_19 = arith.constant -5.000000e-01 : f32
    %26 = vector.broadcast %cst_19 : f32 to vector<8x128xf32>
    %27 = arith.mulf %26, %25 : vector<8x128xf32>
    %28 = vector.broadcast %18 : vector<1x128xf32> to vector<8x128xf32>
    %29 = arith.subf %27, %28 : vector<8x128xf32>
    %cst_20 = arith.constant 0.918938517 : f32
    %30 = vector.broadcast %cst_20 : f32 to vector<8x128xf32>
    %31 = arith.subf %29, %30 : vector<8x128xf32>
    %c4_i32 = arith.constant 4 : i32
    %32 = vector.broadcast %c4_i32 : i32 to vector<8x128xi32>
    %33 = arith.cmpi slt, %24, %32 : vector<8x128xi32>
    %cst_21 = arith.constant 0.000000e+00 : f32
    %34 = vector.broadcast %cst_21 : f32 to vector<8x128xf32>
    %35 = arith.select %33, %31, %34 : vector<8x128xi1>, vector<8x128xf32>
    %cst_22 = arith.constant dense<0.000000e+00> : vector<8xf32>
    %36 = vector.multi_reduction <add>, %35, %cst_22 [1] : vector<8x128xf32> to vector<8xf32>
    %37 = vector.shape_cast %36 : vector<8xf32> to vector<8x1xf32>
    %c5_i32 = arith.constant 5 : i32
    %38 = vector.broadcast %c5_i32 : i32 to vector<8x128xi32>
    %39 = arith.cmpi eq, %24, %38 : vector<8x128xi32>
    %40 = vector.shape_cast %37 : vector<8x1xf32> to vector<8x1xf32>
    %41 = vector.broadcast %40 : vector<8x1xf32> to vector<8x128xf32>
    %42 = arith.select %39, %41, %23 : vector<8x128xi1>, vector<8x128xf32>
    %c0_23 = arith.constant 0 : index
    %c0_24 = arith.constant 0 : index
    %43 = vector.load %arg10[%c0_23, %c0_24] : memref<8x128xf32, #tpu.memory_space<vmem>>, vector<8x128xf32>
    tpu.vector_store %arg10[%c0_23, %c0_24], %42 {strides = array<i32>} : memref<8x128xf32, #tpu.memory_space<vmem>>, vector<8x128xf32>,
    return
  }
  func.func @transform_0(%arg0: i32) -> (i32, i32) {
    %c0_i32 = arith.constant 0 : i32
    %c0_i32_0 = arith.constant 0 : i32
    return %arg0, %c0_i32 : i32, i32
  }
  func.func @transform_1(%arg0: i32) -> (i32, i32) {
    %c0_i32 = arith.constant 0 : i32
    %c0_i32_0 = arith.constant 0 : i32
    return %arg0, %c0_i32 : i32, i32
  }
  func.func @transform_2(%arg0: i32) -> (i32, i32) {
    %c0_i32 = arith.constant 0 : i32
    %c0_i32_0 = arith.constant 0 : i32
    %c0_i32_1 = arith.constant 0 : i32
    return %c0_i32, %c0_i32_0 : i32, i32
  }
  func.func @transform_3(%arg0: i32) -> (i32, i32) {
    %c0_i32 = arith.constant 0 : i32
    %c0_i32_0 = arith.constant 0 : i32
    %c0_i32_1 = arith.constant 0 : i32
    return %c0_i32, %c0_i32_0 : i32, i32
  }
  func.func @transform_4(%arg0: i32) -> (i32, i32) {
    %c0_i32 = arith.constant 0 : i32
    %c0_i32_0 = arith.constant 0 : i32
    %c0_i32_1 = arith.constant 0 : i32
    return %c0_i32, %c0_i32_0 : i32, i32
  }
  func.func @transform_5(%arg0: i32) -> (i32, i32) {
    %c0_i32 = arith.constant 0 : i32
    %c0_i32_0 = arith.constant 0 : i32
    %c0_i32_1 = arith.constant 0 : i32
    return %c0_i32, %c0_i32_0 : i32, i32
  }
  func.func @transform_6(%arg0: i32) -> (i32, i32) {
    %c0_i32 = arith.constant 0 : i32
    %c0_i32_0 = arith.constant 0 : i32
    %c0_i32_1 = arith.constant 0 : i32
    return %c0_i32, %c0_i32_0 : i32, i32
  }
  func.func @transform_7(%arg0: i32) -> (i32, i32) {
    %c0_i32 = arith.constant 0 : i32
    %c0_i32_0 = arith.constant 0 : i32
    %c0_i32_1 = arith.constant 0 : i32
    return %c0_i32, %c0_i32_0 : i32, i32
  }
  func.func @transform_8(%arg0: i32) -> (i32, i32) {
    %c0_i32 = arith.constant 0 : i32
    %c0_i32_0 = arith.constant 0 : i32
    %c0_i32_1 = arith.constant 0 : i32
    return %c0_i32, %c0_i32_0 : i32, i32
  }
  func.func @transform_9(%arg0: i32) -> (i32, i32) {
    %c0_i32 = arith.constant 0 : i32
    %c0_i32_0 = arith.constant 0 : i32
    return %arg0, %c0_i32 : i32, i32
  }
}

</mosaic_0001>

<llo_original>
// kernel: tpu_custom_call.1
$region0: #{tpu_custom_call.1}
  #allocation0 [shape = 'u32[]', space=smem, size = 0x4, offset = 0x4, fixed_abs, tag = 'smem constant byte address 0x4 - core index']
  #allocation1 [shape = 'u32[72,128]{1,0:T(1,128)}', space=vmem, size = 0x9000, scoped, tag = 'internal scratch']
  %s0 = inlined_call_operand.hbm [shape: f32[8,128], index: 0, kind: input, shape index: {}]
  %s1 = inlined_call_operand.hbm [shape: f32[8,128], index: 1, kind: input, shape index: {}]
  %s2 = inlined_call_operand.vmem [shape: f32[1,128], index: 2, kind: input, shape index: {}]
  %s3 = inlined_call_operand.hbm [shape: f32[128,128], index: 3, kind: input, shape index: {}]
  %s4 = inlined_call_operand.vmem [shape: f32[1,128], index: 4, kind: input, shape index: {}]
  %s5 = inlined_call_operand.hbm [shape: f32[128,128], index: 5, kind: input, shape index: {}]
  %s6 = inlined_call_operand.vmem [shape: f32[1,128], index: 6, kind: input, shape index: {}]
  %s7 = inlined_call_operand.hbm [shape: f32[128,128], index: 7, kind: input, shape index: {}]
  %s8 = inlined_call_operand.vmem [shape: f32[1,128], index: 8, kind: input, shape index: {}]
  %s9 = inlined_call_operand.hbm [shape: f32[8,128], index: 9, kind: output, shape index: {}]
  %s10 = sld [smem:[#allocation0]]
  $region66: #{tpu_custom_call.1} parent=0
    _
  %s12 = ssub.s32 1, %s10
  %s13 = scalar_select 0, %s12, %s10
  $region1: #{tpu_custom_call.1} parent=0
    #allocation2 [shape = 'u8[4096]{0}', space=vmem, size = 0x1000, scoped, tag = 'input window, operand 0, single buffered']
    #allocation3 [shape = 's32[1]{0}', space=sflag, size = 0x4, scoped, tag = 'scoped memory for tpu_custom_call.1']
    #allocation4 [shape = 's32[1]{0}', space=sflag, size = 0x4, scoped, tag = 'scoped memory for tpu_custom_call.1']
    #allocation5 [shape = 'u8[4096]{0}', space=vmem, size = 0x1000, scoped, tag = 'input window, operand 1, single buffered']
    #allocation6 [shape = 's32[1]{0}', space=sflag, size = 0x4, scoped, tag = 'scoped memory for tpu_custom_call.1']
    #allocation7 [shape = 'u8[65536]{0}', space=vmem, size = 0x10000, scoped, tag = 'input window, operand 3, single buffered']
    #allocation8 [shape = 'u8[65536]{0}', space=vmem, size = 0x10000, scoped, tag = 'input window, operand 5, single buffered']
    #allocation9 [shape = 's32[1]{0}', space=sflag, size = 0x4, scoped, tag = 'scoped memory for tpu_custom_call.1']
    #allocation10 [shape = 'u8[65536]{0}', space=vmem, size = 0x10000, scoped, tag = 'input window, operand 7, single buffered']
    #allocation11 [shape = 'u8[4096]{0}', space=vmem, size = 0x1000, scoped, tag = 'output window, operand 0, single buffered']
    %14 = vsyncpa [#allocation3], 0
    %15 = vsyncpa [#allocation6], 0
    %16 = vsyncpa [#allocation9], 0
    %17 = vsyncpa [#allocation4], 0
    // Predicated region
    $region2: #{tpu_custom_call.1} parent=1 // pred_check
      _
    $region3: #{tpu_custom_call.1} parent=1 // pred_check_branch
      %19 = sbr.rel (0) target = $region5
    $region4: #{tpu_custom_call.1} parent=1 // pred_region
      %21 = vsyncadd [#allocation3], 0
      %s23 = sshll.u32 %s0, 4
      %s24 = int_to_ptr.hbm [resolvable:$true] %s23
      %s25 = sshll.u32 [#allocation2], 4
      %s26 = int_to_ptr.vmem [resolvable:$true] %s25
      %28 = dma.hbm_to_vmem [thread:$0]  %s24, 128, %s26, [#allocation3]
    $region5: #{tpu_custom_call.1} parent=1 // pred_fallthru
      _
    // Predicated region
    $region6: #{tpu_custom_call.1} parent=1 // pred_check
      _
    $region7: #{tpu_custom_call.1} parent=1 // pred_check_branch
      %30 = sbr.rel (0) target = $region9
    $region8: #{tpu_custom_call.1} parent=1 // pred_region
      %32 = vsyncadd [#allocation6], 0
      %s34 = sshll.u32 %s1, 4
      %s35 = int_to_ptr.hbm [resolvable:$true] %s34
      %s36 = sshll.u32 [#allocation5], 4
      %s37 = int_to_ptr.vmem [resolvable:$true] %s36
      %39 = dma.hbm_to_vmem [thread:$0]  %s35, 128, %s37, [#allocation6]
    $region9: #{tpu_custom_call.1} parent=1 // pred_fallthru
      _
    // Predicated region
    $region10: #{tpu_custom_call.1} parent=1 // pred_check
      _
    $region11: #{tpu_custom_call.1} parent=1 // pred_check_branch
      %41 = sbr.rel (0) target = $region13
    $region12: #{tpu_custom_call.1} parent=1 // pred_region
      _
    $region13: #{tpu_custom_call.1} parent=1 // pred_fallthru
      _
    // Predicated region
    $region14: #{tpu_custom_call.1} parent=1 // pred_check
      _
    $region15: #{tpu_custom_call.1} parent=1 // pred_check_branch
      %43 = sbr.rel (0) target = $region17
    $region16: #{tpu_custom_call.1} parent=1 // pred_region
      %45 = vsyncadd [#allocation6], 0
      %s46 = sshll.u32 %s3, 4
      %s47 = int_to_ptr.hbm [resolvable:$true] %s46
      %s48 = sshll.u32 [#allocation7], 4
      %s49 = int_to_ptr.vmem [resolvable:$true] %s48
      %54 = dma.hbm_to_vmem [thread:$0]  %s47, 2048, %s49, [#allocation6], 128, 128, 8
    $region17: #{tpu_custom_call.1} parent=1 // pred_fallthru
      _
    // Predicated region
    $region18: #{tpu_custom_call.1} parent=1 // pred_check
      _
    $region19: #{tpu_custom_call.1} parent=1 // pred_check_branch
      %56 = sbr.rel (0) target = $region21
    $region20: #{tpu_custom_call.1} parent=1 // pred_region
      _
    $region21: #{tpu_custom_call.1} parent=1 // pred_fallthru
      _
    // Predicated region
    $region22: #{tpu_custom_call.1} parent=1 // pred_check
      _
    $region23: #{tpu_custom_call.1} parent=1 // pred_check_branch
      %58 = sbr.rel (0) target = $region25
    $region24: #{tpu_custom_call.1} parent=1 // pred_region
      %60 = vsyncadd [#allocation9], 0
      %s61 = sshll.u32 %s5, 4
      %s62 = int_to_ptr.hbm [resolvable:$true] %s61
      %s63 = sshll.u32 [#allocation8], 4
      %s64 = int_to_ptr.vmem [resolvable:$true] %s63
      %69 = dma.hbm_to_vmem [thread:$0]  %s62, 2048, %s64, [#allocation9], 128, 128, 8
    $region25: #{tpu_custom_call.1} parent=1 // pred_fallthru
      _
    // Predicated region
    $region26: #{tpu_custom_call.1} parent=1 // pred_check
      _
    $region27: #{tpu_custom_call.1} parent=1 // pred_check_branch
      %71 = sbr.rel (0) target = $region29
    $region28: #{tpu_custom_call.1} parent=1 // pred_region
      _
    $region29: #{tpu_custom_call.1} parent=1 // pred_fallthru
      _
    // Predicated region
    $region30: #{tpu_custom_call.1} parent=1 // pred_check
      _
    $region31: #{tpu_custom_call.1} parent=1 // pred_check_branch
      %73 = sbr.rel (0) target = $region33
    $region32: #{tpu_custom_call.1} parent=1 // pred_region
      %75 = vsyncadd [#allocation9], 0
      %s76 = sshll.u32 %s7, 4
      %s77 = int_to_ptr.hbm [resolvable:$true] %s76
      %s78 = sshll.u32 [#allocation10], 4
      %s79 = int_to_ptr.vmem [resolvable:$true] %s78
      %84 = dma.hbm_to_vmem [thread:$0]  %s77, 2048, %s79, [#allocation9], 128, 128, 8
    $region33: #{tpu_custom_call.1} parent=1 // pred_fallthru
      _
    // Predicated region
    $region34: #{tpu_custom_call.1} parent=1 // pred_check
      _
    $region35: #{tpu_custom_call.1} parent=1 // pred_check_branch
      %86 = sbr.rel (0) target = $region37
    $region36: #{tpu_custom_call.1} parent=1 // pred_region
      _
    $region37: #{tpu_custom_call.1} parent=1 // pred_fallthru
      _
    // Predicated region
    $region38: #{tpu_custom_call.1} parent=1 // pred_check
      _
    $region39: #{tpu_custom_call.1} parent=1 // pred_check_branch
      %88 = sbr.rel (0) target = $region41
    $region40: #{tpu_custom_call.1} parent=1 // pred_region
      %90 = dma.done [#allocation3], 128
    $region41: #{tpu_custom_call.1} parent=1 // pred_fallthru
      _
    // Predicated region
    $region42: #{tpu_custom_call.1} parent=1 // pred_check
      _
    $region43: #{tpu_custom_call.1} parent=1 // pred_check_branch
      %92 = sbr.rel (0) target = $region45
    $region44: #{tpu_custom_call.1} parent=1 // pred_region
      %94 = dma.done [#allocation6], 128
    $region45: #{tpu_custom_call.1} parent=1 // pred_fallthru
      _
    // Predicated region
    $region46: #{tpu_custom_call.1} parent=1 // pred_check
      _
    $region47: #{tpu_custom_call.1} parent=1 // pred_check_branch
      %96 = sbr.rel (0) target = $region49
    $region48: #{tpu_custom_call.1} parent=1 // pred_region
      %98 = dma.done [#allocation6], 2048
    $region49: #{tpu_custom_call.1} parent=1 // pred_fallthru
      _
    // Predicated region
    $region50: #{tpu_custom_call.1} parent=1 // pred_check
      _
    $region51: #{tpu_custom_call.1} parent=1 // pred_check_branch
      %100 = sbr.rel (0) target = $region53
    $region52: #{tpu_custom_call.1} parent=1 // pred_region
      %102 = dma.done [#allocation9], 2048
    $region53: #{tpu_custom_call.1} parent=1 // pred_fallthru
      _
    // Predicated region
    $region54: #{tpu_custom_call.1} parent=1 // pred_check
      _
    $region55: #{tpu_custom_call.1} parent=1 // pred_check_branch
      %104 = sbr.rel (0) target = $region57
    $region56: #{tpu_custom_call.1} parent=1 // pred_region
      %106 = dma.done [#allocation9], 2048
    $region57: #{tpu_custom_call.1} parent=1 // pred_fallthru
      _
    %v107 = vld [vmem:[#allocation2] sm:$0xff]
    %v108 = vld [vmem:[#allocation7] sm:$0xff]
    %v109 = vld [vmem:[#allocation7 + $0x8] sm:$0xff]
    %v110 = vld [vmem:[#allocation7 + $0x10] sm:$0xff]
    %v111 = vld [vmem:[#allocation7 + $0x18] sm:$0xff]
    %v112 = vld [vmem:[#allocation7 + $0x20] sm:$0xff]
    %v113 = vld [vmem:[#allocation7 + $0x28] sm:$0xff]
    %v114 = vld [vmem:[#allocation7 + $0x30] sm:$0xff]
    %v115 = vld [vmem:[#allocation7 + $0x38] sm:$0xff]
    %v116 = vld [vmem:[#allocation7 + $0x40] sm:$0xff]
    %v117 = vld [vmem:[#allocation7 + $0x48] sm:$0xff]
    %v118 = vld [vmem:[#allocation7 + $0x50] sm:$0xff]
    %v119 = vld [vmem:[#allocation7 + $0x58] sm:$0xff]
    %v120 = vld [vmem:[#allocation7 + $0x60] sm:$0xff]
    %v121 = vld [vmem:[#allocation7 + $0x68] sm:$0xff]
    %v122 = vld [vmem:[#allocation7 + $0x70] sm:$0xff]
    %v123 = vld [vmem:[#allocation7 + $0x78] sm:$0xff]
    %v124 = vld [vmem:[%s4] sm:$0x1]
    %v126 = vperm.slane %v124, 0
    %128 = vmatpush.msra.mxu0 %v123
    %129 = vmatpush.msra.mxu0 %v122
    %130 = vmatpush.msra.mxu0 %v121
    %131 = vmatpush.msra.mxu0 %v120
    %132 = vmatpush.msra.mxu0 %v119
    %133 = vmatpush.msra.mxu0 %v118
    %134 = vmatpush.msra.mxu0 %v117
    %135 = vmatpush.msra.mxu0 %v116
    %136 = vmatpush.msra.mxu0 %v115
    %137 = vmatpush.msra.mxu0 %v114
    %138 = vmatpush.msra.mxu0 %v113
    %139 = vmatpush.msra.mxu0 %v112
    %140 = vmatpush.msra.mxu0 %v111
    %141 = vmatpush.msra.mxu0 %v110
    %142 = vmatpush.msra.mxu0 %v109
    %143 = vmatpush.msra.mxu0 %v108
    %144 = vmatmul.f32.gmra.mxu0 %v107
    %v145 = vpop.f32.mrf.mxu0
    %v146 = vadd.f32 %v126, %v145
    %147 = vdwg.mxu0
    %v148 = vtanh.pop %v146
    %v149 = vld [vmem:[#allocation8] sm:$0xff]
    %v150 = vld [vmem:[#allocation8 + $0x8] sm:$0xff]
    %v151 = vld [vmem:[#allocation8 + $0x10] sm:$0xff]
    %v152 = vld [vmem:[#allocation8 + $0x18] sm:$0xff]
    %v153 = vld [vmem:[#allocation8 + $0x20] sm:$0xff]
    %v154 = vld [vmem:[#allocation8 + $0x28] sm:$0xff]
    %v155 = vld [vmem:[#allocation8 + $0x30] sm:$0xff]
    %v156 = vld [vmem:[#allocation8 + $0x38] sm:$0xff]
    %v157 = vld [vmem:[#allocation8 + $0x40] sm:$0xff]
    %v158 = vld [vmem:[#allocation8 + $0x48] sm:$0xff]
    %v159 = vld [vmem:[#allocation8 + $0x50] sm:$0xff]
    %v160 = vld [vmem:[#allocation8 + $0x58] sm:$0xff]
    %v161 = vld [vmem:[#allocation8 + $0x60] sm:$0xff]
    %v162 = vld [vmem:[#allocation8 + $0x68] sm:$0xff]
    %v163 = vld [vmem:[#allocation8 + $0x70] sm:$0xff]
    %v164 = vld [vmem:[#allocation8 + $0x78] sm:$0xff]
    %v165 = vld [vmem:[%s6] sm:$0x1]
    %v167 = vperm.slane %v165, 0
    %169 = vmatpush.msra.mxu0 %v164
    %170 = vmatpush.msra.mxu0 %v163
    %171 = vmatpush.msra.mxu0 %v162
    %172 = vmatpush.msra.mxu0 %v161
    %173 = vmatpush.msra.mxu0 %v160
    %174 = vmatpush.msra.mxu0 %v159
    %175 = vmatpush.msra.mxu0 %v158
    %176 = vmatpush.msra.mxu0 %v157
    %177 = vmatpush.msra.mxu0 %v156
    %178 = vmatpush.msra.mxu0 %v155
    %179 = vmatpush.msra.mxu0 %v154
    %180 = vmatpush.msra.mxu0 %v153
    %181 = vmatpush.msra.mxu0 %v152
    %182 = vmatpush.msra.mxu0 %v151
    %183 = vmatpush.msra.mxu0 %v150
    %184 = vmatpush.msra.mxu0 %v149
    %185 = vmatmul.f32.gmra.mxu0 %v148
    %v186 = vpop.f32.mrf.mxu0
    %v187 = vadd.f32 %v167, %v186
    %188 = vdwg.mxu0
    %v189 = vtanh.pop %v187
    %v190 = vld [vmem:[#allocation10] sm:$0xff]
    %v191 = vld [vmem:[#allocation10 + $0x8] sm:$0xff]
    %v192 = vld [vmem:[#allocation10 + $0x10] sm:$0xff]
    %v193 = vld [vmem:[#allocation10 + $0x18] sm:$0xff]
    %v194 = vld [vmem:[#allocation10 + $0x20] sm:$0xff]
    %v195 = vld [vmem:[#allocation10 + $0x28] sm:$0xff]
    %v196 = vld [vmem:[#allocation10 + $0x30] sm:$0xff]
    %v197 = vld [vmem:[#allocation10 + $0x38] sm:$0xff]
    %v198 = vld [vmem:[#allocation10 + $0x40] sm:$0xff]
    %v199 = vld [vmem:[#allocation10 + $0x48] sm:$0xff]
    %v200 = vld [vmem:[#allocation10 + $0x50] sm:$0xff]
    %v201 = vld [vmem:[#allocation10 + $0x58] sm:$0xff]
    %v202 = vld [vmem:[#allocation10 + $0x60] sm:$0xff]
    %v203 = vld [vmem:[#allocation10 + $0x68] sm:$0xff]
    %v204 = vld [vmem:[#allocation10 + $0x70] sm:$0xff]
    %v205 = vld [vmem:[#allocation10 + $0x78] sm:$0xff]
    %v206 = vld [vmem:[%s8] sm:$0x1]
    %v208 = vperm.slane %v206, 0
    %210 = vmatpush.msra.mxu0 %v205
    %211 = vmatpush.msra.mxu0 %v204
    %212 = vmatpush.msra.mxu0 %v203
    %213 = vmatpush.msra.mxu0 %v202
    %214 = vmatpush.msra.mxu0 %v201
    %215 = vmatpush.msra.mxu0 %v200
    %216 = vmatpush.msra.mxu0 %v199
    %217 = vmatpush.msra.mxu0 %v198
    %218 = vmatpush.msra.mxu0 %v197
    %219 = vmatpush.msra.mxu0 %v196
    %220 = vmatpush.msra.mxu0 %v195
    %221 = vmatpush.msra.mxu0 %v194
    %222 = vmatpush.msra.mxu0 %v193
    %223 = vmatpush.msra.mxu0 %v192
    %224 = vmatpush.msra.mxu0 %v191
    %225 = vmatpush.msra.mxu0 %v190
    %226 = vmatmul.f32.gmra.mxu0 %v189
    %v227 = vpop.f32.mrf.mxu0
    %v228 = vadd.f32 %v208, %v227
    %229 = vdwg.mxu0
    %v230 = vld [vmem:[%s2] sm:$0x1]
    %v231 = vmul.f32 %v230, 1.442695
    %v232 = vpow.pop %v231
    %v233 = vld [vmem:[#allocation5] sm:$0xff]
    %v235 = vperm.slane %v232, 0
    %v237 = vmul.f32 %v235, %v233
    %v238 = vadd.f32 %v228, %v237
    %v239 = vlaneseq
    %v240 = vand.u32 %v239, 127
    %v241 = vmul.f32 %v233, %v233
    %v242 = vmul.f32 %v241, -0.5
    %v244 = vperm.slane %v230, 0
    %v246 = vsub.f32 %v242, %v244
    %v247 = vsub.f32 %v246, 0.9189385
    %vm248 = vcmp.lt.s32.totalorder %v240, 4
    %v249 = vsel %vm248, %v247, 0.0
    %250 = vadd.xlane.f32.xlu0 %v249
    %v251 = vpop.xlane.xlu0 %250
    %vm252 = vcmp.eq.s32.totalorder %v240, 5
    %v253 = vsel %vm252, %v251, %v238
    %254 = vst [vmem:[#allocation11] sm:$0xff] %v253
    // Predicated region
    $region58: #{tpu_custom_call.1} parent=1 // pred_check
      _
    $region59: #{tpu_custom_call.1} parent=1 // pred_check_branch
      %256 = sbr.rel (0) target = $region61
    $region60: #{tpu_custom_call.1} parent=1 // pred_region
      %258 = vsyncadd [#allocation4], 0
      %s260 = sshll.u32 [#allocation11], 4
      %s261 = int_to_ptr.vmem [resolvable:$true] %s260
      %s262 = sshll.u32 %s9, 4
      %s263 = int_to_ptr.hbm [resolvable:$true] %s262
      %265 = dma.vmem_to_hbm [thread:$0]  %s261, 128, %s263, [#allocation4]
    $region61: #{tpu_custom_call.1} parent=1 // pred_fallthru
      _
    // Predicated region
    $region62: #{tpu_custom_call.1} parent=1 // pred_check
      _
    $region63: #{tpu_custom_call.1} parent=1 // pred_check_branch
      %267 = sbr.rel (0) target = $region65
    $region64: #{tpu_custom_call.1} parent=1 // pred_region
      %269 = dma.done [#allocation4], 128
    $region65: #{tpu_custom_call.1} parent=1 // pred_fallthru
      _
    %270 = vsyncpa [#allocation3], 1
    %271 = vsyncpa [#allocation6], 1
    %272 = vsyncpa [#allocation9], 1
    %273 = vsyncpa [#allocation4], 1

</llo_original>
